<compile_context>
chip_gen: v6e
topology: v6e:2x2x1
jax: 0.10.0
libtpu: 0.0.40
codegen_flags: <defaults>
</compile_context>

<pallas_src>
import jax
import jax.numpy as jnp
import numpy as np
from jax.experimental import pallas as pl
from jax.experimental.pallas import tpu as pltpu


def _round_up(x, m):
    return ((x + m - 1) // m) * m


def _xtr_head_kernel(h_ref, w_ref, m_ref, o_ref):
    """One row tile:  out = normalize(h @ w, dim=-1) * mask   (torch semantics).

    h_ref: (TM, D_in)    activations, native dtype (row tile of flattened [B*L, D_in])
    w_ref: (D_in, D_out) weight, pre-transposed at model load; VMEM-resident
    m_ref: (TM, 1)       f32 padding mask (0/1)
    o_ref: (TM, D_out)   output tile
    """
    # MXU matmul with f32 accumulation; contraction on D_in, no in-kernel transpose.
    q = jnp.dot(h_ref[...], w_ref[...], preferred_element_type=jnp.float32)

    # Epilogue strictly in f32.
    ss = jnp.sum(q * q, axis=-1, keepdims=True)           # (TM, 1), XLU lane reduce
    # torch F.normalize(eps=1e-12): divide by max(||q||, eps)  ==  * rsqrt(max(||q||^2, eps^2)).
    # Fold the 0/1 padding mask into the per-row scale: masked rows become exactly 0
    # (0 * large-finite, no NaN), matching (q*0)/max(0, eps) == 0 in torch.
    scale = m_ref[...].astype(jnp.float32) * jax.lax.rsqrt(jnp.maximum(ss, 1e-24))
    o_ref[...] = (q * scale).astype(o_ref.dtype)


def prepare_xtr_weight(weight, dtype=None):
    """One-time (model-load) prep: PyTorch Linear weight [D_out, D_in] -> [D_in, D_out].
    Hoisted out of the per-call path so no transpose/cast op runs per invocation."""
    w_t = weight.T
    if dtype is not None:
        w_t = w_t.astype(dtype)
    return w_t


def xtr_encode_head(hidden, w_t, mask, *, tm=1024):
    """hidden: [B, L, D_in] (native dtype), w_t: [D_in, D_out] (pre-transposed),
    mask: [B, L, 1] float  ->  [B, L, D_out] in hidden.dtype."""
    B, L, D_in = hidden.shape
    D_out = w_t.shape[1]
    BL = B * L

    # Row tile: large (default 1024) for real shapes, shrunk for tiny inputs so the
    # grid has >= 4 steps (double-buffering + megacore sharding stay effective).
    # Rounded to the f32 sublane quantum (8).  TM need not divide BL: the grid uses
    # cdiv and the Pallas pipeline masks out-of-bounds stores on the last tile.
    TM = min(tm, max(8, _round_up(pl.cdiv(BL, 4), 8)), _round_up(BL, 8))
    grid = (pl.cdiv(BL, TM),)

    # Free reshapes — no dtype cast, no pad, no extra HBM pass.
    h_flat = hidden.reshape(BL, D_in)
    m_flat = mask.reshape(BL, 1).astype(jnp.float32)

    out_itemsize = jnp.dtype(hidden.dtype).itemsize
    cost = pl.CostEstimate(
        flops=2 * BL * D_in * D_out,
        transcendentals=BL,                          # one rsqrt per row
        bytes_accessed=(h_flat.size * h_flat.dtype.itemsize
                        + w_t.size * w_t.dtype.itemsize
                        + m_flat.size * m_flat.dtype.itemsize
                        + BL * D_out * out_itemsize),
    )

    out = pl.pallas_call(
        _xtr_head_kernel,
        out_shape=jax.ShapeDtypeStruct((BL, D_out), hidden.dtype),
        grid_spec=pltpu.PrefetchScalarGridSpec(
            num_scalar_prefetch=0,
            grid=grid,
            in_specs=[
                pl.BlockSpec((TM, D_in), lambda i: (i, 0)),
                pl.BlockSpec((D_in, D_out), lambda i: (0, 0)),   # weight: constant block, VMEM-resident
                pl.BlockSpec((TM, 1), lambda i: (i, 0)),
            ],
            out_specs=pl.BlockSpec((TM, D_out), lambda i: (i, 0)),
        ),
        compiler_params=pltpu.CompilerParams(
            dimension_semantics=("parallel",),       # row tiles shard across v7x TCs
        ),
        cost_estimate=cost,
    )(h_flat, w_t, m_flat)

    return out.reshape(B, L, D_out)


def xtr_encoder_forward(input_ids, last_hidden_state, w_t):
    """Mirrors XTREncoder.forward after the HF encoder:
       Q = linear(last_hidden_state); Q *= mask; Q = normalize(Q, dim=2)."""
    mask = (input_ids != 0)[:, :, None].astype(jnp.float32)   # (B, L, 1), torch .float()
    encodings = xtr_encode_head(last_hidden_state, w_t, mask)
    return {"encodings": encodings, "mask": mask}


if __name__ == "__main__":
    # Small shapes consistent with the module's forward:
    #   batch B=2, seq L=16, encoder hidden D_in=256, XTR output dim D_out=128.
    B, L, D_in, D_out = 2, 16, 256, 128

    key = jax.random.PRNGKey(0)
    k_h, k_w, k_ids = jax.random.split(key, 3)

    # Synthetic "last_hidden_state" standing in for the pretrained T5 encoder output.
    last_hidden_state = jax.random.normal(k_h, (B, L, D_in), dtype=jnp.float32)

    # Deterministic init of XTRLinear weight: Linear(D_in, D_out, bias=False),
    # PyTorch weight shape = (out_features, in_features).
    bound = 1.0 / np.sqrt(D_in)
    linear_weight = jax.random.uniform(
        k_w, (D_out, D_in), dtype=jnp.float32, minval=-bound, maxval=bound)

    # One-time (model-load) weight prep — hoisted out of the per-call path.
    w_t = prepare_xtr_weight(linear_weight)

    # Synthetic token ids with trailing padding (id 0) per sequence.
    input_ids = jax.random.randint(k_ids, (B, L), minval=1, maxval=32000, dtype=jnp.int32)
    pad_start = jnp.array([12, 9], dtype=jnp.int32)  # pad lengths differ per batch item
    pos = jnp.arange(L, dtype=jnp.int32)[None, :]
    input_ids = jnp.where(pos < pad_start[:, None], input_ids, 0)

    out = xtr_encoder_forward(input_ids, last_hidden_state, w_t)
    enc = np.asarray(jax.block_until_ready(out["encodings"]))
    msk = np.asarray(jax.block_until_ready(out["mask"]))
    assert enc.shape == (B, L, D_out) and msk.shape == (B, L, 1)

    # Reference: exact torch semantics in float64 on host.
    h64 = np.asarray(last_hidden_state, dtype=np.float64)
    w64 = np.asarray(linear_weight, dtype=np.float64)
    m64 = np.asarray(msk, dtype=np.float64)
    q_ref = np.einsum("bld,od->blo", h64, w64)
    q_ref = q_ref * m64
    nrm = np.linalg.norm(q_ref, axis=2, keepdims=True)
    q_ref = q_ref / np.maximum(nrm, 1e-12)
    # Tolerance covers MXU default-precision f32 matmul rounding.
    np.testing.assert_allclose(enc, q_ref, atol=2e-2, rtol=2e-2)

    # Structural checks: masked rows exactly zero; unmasked rows unit-norm.
    masked_rows = (msk[..., 0] == 0.0)
    assert np.all(enc[masked_rows] == 0.0)
    norms = np.linalg.norm(enc[~masked_rows], axis=-1)
    np.testing.assert_allclose(norms, 1.0, atol=1e-3, rtol=1e-3)

    print("KERNEL_OK")
</pallas_src>

<mosaic_0001>
module attributes {stable_mosaic.version = 11 : i64} {
  func.func @_xtr_head_kernel(%arg0: i32, %arg1: memref<8x256xf32, #tpu.memory_space<vmem>>, %arg2: memref<256x128xf32, #tpu.memory_space<vmem>>, %arg3: memref<8x1xf32, #tpu.memory_space<vmem>>, %arg4: memref<8x128xf32, #tpu.memory_space<vmem>>) attributes {dimension_semantics = [#tpu.dimension_semantics<parallel>], iteration_bounds = array<i64: 4>, scalar_prefetch = 0 : i64, scratch_operands = 0 : i64, tpu.core_type = #tpu.core_type<tc>, window_params = [{transform_indices = @transform_0, window_bounds = array<i64: 8, 256>}, {pipeline_mode = #tpu.pipeline_mode<synchronous>, transform_indices = @transform_1, window_bounds = array<i64: 256, 128>}, {transform_indices = @transform_2, window_bounds = array<i64: 8, 1>}, {transform_indices = @transform_3, window_bounds = array<i64: 8, 128>}]} {
    %c0 = arith.constant 0 : index
    %c0_0 = arith.constant 0 : index
    %0 = vector.load %arg1[%c0, %c0_0] : memref<8x256xf32, #tpu.memory_space<vmem>>, vector<8x256xf32>
    %c0_1 = arith.constant 0 : index
    %c0_2 = arith.constant 0 : index
    %1 = vector.load %arg2[%c0_1, %c0_2] : memref<256x128xf32, #tpu.memory_space<vmem>>, vector<256x128xf32>
    %cst = arith.constant dense<0.000000e+00> : vector<8x128xf32>
    %2 = tpu.matmul %0, %1, %cst {dimension_numbers = #tpu.dot_dimension_numbers<[1], [0], [0], [1], [0, 0, 1, 1], [], []>} : vector<8x256xf32>, vector<256x128xf32>, vector<8x128xf32> -> vector<8x128xf32>
    %3 = arith.mulf %2, %2 : vector<8x128xf32>
    %cst_3 = arith.constant dense<0.000000e+00> : vector<8xf32>
    %4 = vector.multi_reduction <add>, %3, %cst_3 [1] : vector<8x128xf32> to vector<8xf32>
    %5 = vector.shape_cast %4 : vector<8xf32> to vector<8x1xf32>
    %c0_4 = arith.constant 0 : index
    %c0_5 = arith.constant 0 : index
    %6 = vector.load %arg3[%c0_4, %c0_5] : memref<8x1xf32, #tpu.memory_space<vmem>>, vector<8x1xf32>
    %cst_6 = arith.constant 1.000000e-24 : f32
    %7 = vector.broadcast %cst_6 : f32 to vector<8x1xf32>
    %8 = arith.maximumf %5, %7 : vector<8x1xf32>
    %9 = math.rsqrt %8 : vector<8x1xf32>
    %10 = arith.mulf %6, %9 : vector<8x1xf32>
    %11 = vector.broadcast %10 : vector<8x1xf32> to vector<8x128xf32>
    %12 = arith.mulf %2, %11 : vector<8x128xf32>
    %c0_7 = arith.constant 0 : index
    %c0_8 = arith.constant 0 : index
    %13 = vector.load %arg4[%c0_7, %c0_8] : memref<8x128xf32, #tpu.memory_space<vmem>>, vector<8x128xf32>
    tpu.vector_store %arg4[%c0_7, %c0_8], %12 {strides = array<i32>} : memref<8x128xf32, #tpu.memory_space<vmem>>, vector<8x128xf32>,
    return
  }
  func.func @transform_0(%arg0: i32) -> (i32, i32) {
    %c0_i32 = arith.constant 0 : i32
    %c0_i32_0 = arith.constant 0 : i32
    return %arg0, %c0_i32 : i32, i32
  }
  func.func @transform_1(%arg0: i32) -> (i32, i32) {
    %c0_i32 = arith.constant 0 : i32
    %c0_i32_0 = arith.constant 0 : i32
    %c0_i32_1 = arith.constant 0 : i32
    return %c0_i32, %c0_i32_0 : i32, i32
  }
  func.func @transform_2(%arg0: i32) -> (i32, i32) {
    %c0_i32 = arith.constant 0 : i32
    %c0_i32_0 = arith.constant 0 : i32
    return %arg0, %c0_i32 : i32, i32
  }
  func.func @transform_3(%arg0: i32) -> (i32, i32) {
    %c0_i32 = arith.constant 0 : i32
    %c0_i32_0 = arith.constant 0 : i32
    return %arg0, %c0_i32 : i32, i32
  }
}

</mosaic_0001>

<llo_original>
// kernel: tpu_custom_call.1
$region0: #{tpu_custom_call.1}
  #allocation0 [shape = 'u32[]', space=smem, size = 0x4, offset = 0x4, fixed_abs, tag = 'smem constant byte address 0x4 - core index']
  #allocation1 [shape = 'u32[144,128]{1,0:T(1,128)}', space=vmem, size = 0x12000, scoped, tag = 'internal scratch']
  %s0 = inlined_call_operand.hbm [shape: f32[32,256], index: 0, kind: input, shape index: {}]
  %s1 = inlined_call_operand.hbm [shape: f32[256,128], index: 1, kind: input, shape index: {}]
  %s2 = inlined_call_operand.vmem [shape: f32[32,1], index: 2, kind: input, shape index: {}]
  %s3 = inlined_call_operand.hbm [shape: f32[32,128], index: 3, kind: output, shape index: {}]
  %s4 = sld [smem:[#allocation0]]
  $region53: #{tpu_custom_call.1} parent=0
    _
  %s6 = ssub.s32 1, %s4
  %s7 = scalar_select 0, %s6, %s4
  $region1: #{tpu_custom_call.1} parent=0
    #allocation2 [shape = 'u8[16384]{0}', space=vmem, size = 0x4000, scoped, tag = 'input window, operand 0']
    #allocation3 [shape = 's32[2]{0}', space=sflag, size = 0x8, scoped, tag = 'scoped memory for tpu_custom_call.1']
    #allocation4 [shape = 's32[2]{0}', space=sflag, size = 0x8, scoped, tag = 'scoped memory for tpu_custom_call.1']
    #allocation5 [shape = 'u8[131072]{0}', space=vmem, size = 0x20000, scoped, tag = 'input window, operand 1, single buffered']
    #allocation6 [shape = 's32[1]{0}', space=sflag, size = 0x4, scoped, tag = 'scoped memory for tpu_custom_call.1']
    #allocation7 [shape = 'u8[8192]{0}', space=vmem, size = 0x2000, scoped, tag = 'output window, operand 0']
    %8 = vsyncpa [#allocation3], 0
    %s9 = scalar_lea.sflag [#allocation3], 1
    %10 = vsyncpa %s9, 0
    %11 = vsyncpa [#allocation6], 0
    %12 = vsyncpa [#allocation4], 0
    %s13 = scalar_lea.sflag [#allocation4], 1
    %14 = vsyncpa %s13, 0
    loop: start=0, step=1, limit=6
    $region2: #{tpu_custom_call.1} parent=1 // loop_pre_header
      _
    $region3: #{tpu_custom_call.1} parent=1 // loop_header
      %s16 = sphi 0, %s20
      %p17 = scmp.ge.s32.totalorder %s16, 6
      %s26 = sphi 0, %s28
      %s29 = sphi 0, %s26
      %s30 = sphi 0, %s29
      %s46 = sphi 0, %s30
      %s50 = sphi 0, %s50
      %s52 = sphi 0, %s50
      %s53 = sphi 0, %s52
      %s67 = sphi 0, %s53
      %s73 = sphi 0, %s75
      %s76 = sphi 0, %s73
      %s77 = sphi 0, %s76
      %s93 = sphi 0, %s77
      %s99 = sphi 0, %s101
      %s102 = sphi 0, %s99
      %s103 = sphi 0, %s102
      %s119 = sphi 0, %s103
    $region4: #{tpu_custom_call.1} parent=1 // loop_header_branch
      %19 = sbr.rel (%p17) target = $region8
    $region5: #{tpu_custom_call.1} parent=1 // loop_body
      %s21 = ssub.s32 %s16, 1
      %s22 = ssub.s32 %s16, 2
      %s23 = sadd.s32 %s16, 1
      %s24 = ssub.s32 %s16, %s23
      %p25 = scmp.eq.s32.totalorder %s24, 0
      %s27 = sadd.s32 %s26, 1
      %s28 = scalar_select %p25, %s26, %s27
      %p31 = pneg %p25
      %p32 = scmp.eq.s32.totalorder %s16, 3
      %p33 = por %p31, %p32
      %p34 = scmp.ne.s32.totalorder %s26, %s29
      %p35 = scmp.eq.s32.totalorder %s16, 0
      %p36 = por %p34, %p35
      %p37 = scmp.ne.s32.totalorder %s26, %s29
      %p38 = scmp.eq.s32.totalorder %s21, 3
      %p39 = por %p37, %p38
      %p40 = scmp.ne.s32.totalorder %s29, %s30
      %p41 = scmp.eq.s32.totalorder %s21, 0
      %p42 = por %p40, %p41
      %p43 = scmp.ne.s32.totalorder %s29, %s30
      %p44 = scmp.eq.s32.totalorder %s22, 3
      %p45 = por %p43, %p44
      %p47 = scmp.ne.s32.totalorder %s30, %s46
      %p48 = scmp.eq.s32.totalorder %s22, 0
      %p49 = por %p47, %p48
      %s51 = sadd.s32 %s50, 1
      %p54 = scmp.eq.s32.totalorder %s16, 3
      %p55 = scmp.ne.s32.totalorder %s50, %s52
      %p56 = scmp.eq.s32.totalorder %s16, 0
      %p57 = por %p55, %p56
      %p58 = scmp.ne.s32.totalorder %s50, %s52
      %p59 = scmp.eq.s32.totalorder %s21, 3
      %p60 = por %p58, %p59
      %p61 = scmp.ne.s32.totalorder %s52, %s53
      %p62 = scmp.eq.s32.totalorder %s21, 0
      %p63 = por %p61, %p62
      %p64 = scmp.ne.s32.totalorder %s52, %s53
      %p65 = scmp.eq.s32.totalorder %s22, 3
      %p66 = por %p64, %p65
      %p68 = scmp.ne.s32.totalorder %s53, %s67
      %p69 = scmp.eq.s32.totalorder %s22, 0
      %p70 = por %p68, %p69
      %s71 = ssub.s32 %s16, %s23
      %p72 = scmp.eq.s32.totalorder %s71, 0
      %s74 = sadd.s32 %s73, 1
      %s75 = scalar_select %p72, %s73, %s74
      %p78 = pneg %p72
      %p79 = scmp.eq.s32.totalorder %s16, 3
      %p80 = por %p78, %p79
      %p81 = scmp.ne.s32.totalorder %s73, %s76
      %p82 = scmp.eq.s32.totalorder %s16, 0
      %p83 = por %p81, %p82
      %p84 = scmp.ne.s32.totalorder %s73, %s76
      %p85 = scmp.eq.s32.totalorder %s21, 3
      %p86 = por %p84, %p85
      %p87 = scmp.ne.s32.totalorder %s76, %s77
      %p88 = scmp.eq.s32.totalorder %s21, 0
      %p89 = por %p87, %p88
      %p90 = scmp.ne.s32.totalorder %s76, %s77
      %p91 = scmp.eq.s32.totalorder %s22, 3
      %p92 = por %p90, %p91
      %p94 = scmp.ne.s32.totalorder %s77, %s93
      %p95 = scmp.eq.s32.totalorder %s22, 0
      %p96 = por %p94, %p95
      %s97 = ssub.s32 %s16, %s23
      %p98 = scmp.eq.s32.totalorder %s97, 0
      %s100 = sadd.s32 %s99, 1
      %s101 = scalar_select %p98, %s99, %s100
      %p104 = pneg %p98
      %p105 = scmp.eq.s32.totalorder %s16, 3
      %p106 = por %p104, %p105
      %p107 = scmp.ne.s32.totalorder %s99, %s102
      %p108 = scmp.eq.s32.totalorder %s16, 0
      %p109 = por %p107, %p108
      %p110 = scmp.ne.s32.totalorder %s99, %s102
      %p111 = scmp.eq.s32.totalorder %s21, 3
      %p112 = por %p110, %p111
      %p113 = scmp.ne.s32.totalorder %s102, %s103
      %p114 = scmp.eq.s32.totalorder %s21, 0
      %p115 = por %p113, %p114
      %p116 = scmp.ne.s32.totalorder %s102, %s103
      %p117 = scmp.eq.s32.totalorder %s22, 3
      %p118 = por %p116, %p117
      %p120 = scmp.ne.s32.totalorder %s103, %s119
      %p121 = scmp.eq.s32.totalorder %s22, 0
      %p122 = por %p120, %p121
      %p123 = scmp.le.s32.totalorder 1, %s16
      %p124 = scmp.lt.s32.totalorder %s16, 5
      %p125 = pnand %p123, %p124
      %p126 = pneg %p125
      // Predicated region
      $region9: #{tpu_custom_call.1} parent=5 // pred_check
        _
      $region10: #{tpu_custom_call.1} parent=5 // pred_check_branch
        %128 = sbr.rel (%p125) target = $region12
      $region11: #{tpu_custom_call.1} parent=5 // pred_region
        %s129 = ssub.s32 %s16, 1
        // Predicated region
        $region13: #{tpu_custom_call.1} parent=11 // pred_check
          %p130 = pneg %p63
        $region14: #{tpu_custom_call.1} parent=11 // pred_check_branch
          %132 = sbr.rel (%p130) target = $region16
        $region15: #{tpu_custom_call.1} parent=11 // pred_region
          %s134 = ssub.s32 4096, 4096
          %135 = vsyncadd [#allocation6], %s134
          %s136 = sshll.u32 [#allocation5], 4
          %s137 = int_to_ptr.vmem [resolvable:$true] %s136
          %142 = dma.hbm_to_vmem [thread:$0]  %s1, 4096, %s137, [#allocation6], 128, 128, 8
        $region16: #{tpu_custom_call.1} parent=11 // pred_fallthru
          _
      $region12: #{tpu_custom_call.1} parent=5 // pred_fallthru
        _
      %p143 = scmp.lt.s32.totalorder %s16, 4
      // Predicated region
      $region17: #{tpu_custom_call.1} parent=5 // pred_check
        %p144 = pneg %p143
      $region18: #{tpu_custom_call.1} parent=5 // pred_check_branch
        %146 = sbr.rel (%p144) target = $region20
      $region19: #{tpu_custom_call.1} parent=5 // pred_region
        // Predicated region
        $region21: #{tpu_custom_call.1} parent=19 // pred_check
          %p147 = pneg %p36
        $region22: #{tpu_custom_call.1} parent=19 // pred_check_branch
          %149 = sbr.rel (%p147) target = $region24
        $region23: #{tpu_custom_call.1} parent=19 // pred_region
          %s150 = sand.u32 %s26, 1
          %s151 = scalar_lea.sflag [#allocation3], %s150
          %s152 = sand.u32 %s26, 1
          %s153 = smul.addr %s152, 16
          %s154 = scalar_lea.vmem [#allocation2], %s153
          %s156 = ssub.s32 256, 256
          %157 = vsyncadd %s151, %s156
          %s158 = smul.addr %s16, 2
          %s159 = smul.addr %s158, 128
          %s160 = scalar_lea.hbm %s0, %s159
          %s162 = sshll.u32 %s154, 4
          %s163 = int_to_ptr.vmem [resolvable:$true] %s162
          %165 = dma.hbm_to_vmem [thread:$0]  %s160, 256, %s163, %s151
        $region24: #{tpu_custom_call.1} parent=19 // pred_fallthru
          _
        // Predicated region
        $region25: #{tpu_custom_call.1} parent=19 // pred_check
          %p166 = pneg %p83
        $region26: #{tpu_custom_call.1} parent=19 // pred_check_branch
          %168 = sbr.rel (%p166) target = $region28
        $region27: #{tpu_custom_call.1} parent=19 // pred_region
          %p169 = scmp.lt.s32.totalorder %s16, 3
          %s170 = scalar_select %p169, %s16, 3
          %s171 = smul.addr %s170, 8
          %s172 = scalar_lea.vmem %s2, %s171
        $region28: #{tpu_custom_call.1} parent=19 // pred_fallthru
          _
      $region20: #{tpu_custom_call.1} parent=5 // pred_fallthru
        _
      %p173 = scmp.le.s32.totalorder 1, %s16
      %p174 = scmp.lt.s32.totalorder %s16, 5
      %p175 = pnand %p173, %p174
      %p176 = pneg %p175
      // Predicated region
      $region29: #{tpu_custom_call.1} parent=5 // pred_check
        _
      $region30: #{tpu_custom_call.1} parent=5 // pred_check_branch
        %178 = sbr.rel (%p175) target = $region32
      $region31: #{tpu_custom_call.1} parent=5 // pred_region
        %s179 = ssub.s32 %s16, 1
        %s180 = sand.u32 %s29, 1
        %s181 = scalar_lea.sflag [#allocation3], %s180
        %s182 = sand.u32 %s29, 1
        %s183 = smul.addr %s182, 16
        %s184 = scalar_lea.vmem [#allocation2], %s183
        // Predicated region
        $region33: #{tpu_custom_call.1} parent=31 // pred_check
          %p185 = pneg %p42
        $region34: #{tpu_custom_call.1} parent=31 // pred_check_branch
          %187 = sbr.rel (%p185) target = $region36
        $region35: #{tpu_custom_call.1} parent=31 // pred_region
          %188 = dma.done %s181, 256
        $region36: #{tpu_custom_call.1} parent=31 // pred_fallthru
          _
        // Predicated region
        $region37: #{tpu_custom_call.1} parent=31 // pred_check
          %p189 = pneg %p63
        $region38: #{tpu_custom_call.1} parent=31 // pred_check_branch
          %191 = sbr.rel (%p189) target = $region40
        $region39: #{tpu_custom_call.1} parent=31 // pred_region
          %192 = dma.done [#allocation6], 4096
        $region40: #{tpu_custom_call.1} parent=31 // pred_fallthru
          _
        %s193 = sand.u32 %s29, 1
        %s194 = scalar_lea.sflag [#allocation3], %s193
        %s195 = sand.u32 %s29, 1
        %s196 = smul.addr %s195, 16
        %s197 = scalar_lea.vmem [#allocation2], %s196
        %p198 = pneg %p42
        %p199 = pneg %p39
        %p200 = pneg %p63
        %p201 = pneg %p60
        %p202 = scmp.lt.s32.totalorder %s21, 3
        %s203 = scalar_select %p202, %s21, 3
        %s204 = smul.addr %s203, 8
        %s205 = scalar_lea.vmem %s2, %s204
        %p206 = pneg %p89
        %p207 = pneg %p86
        %p208 = pneg %p115
        %p209 = pneg %p112
        %s210 = sand.u32 %s102, 1
        %s211 = scalar_lea.sflag [#allocation4], %s210
        %s212 = sand.u32 %s102, 1
        %s213 = smul.addr %s212, 8
        %s214 = scalar_lea.vmem [#allocation7], %s213
        %p215 = scmp.lt.s32.totalorder %s21, 3
        %s216 = scalar_select %p215, %s21, 3
        %s217 = smul.addr %s216, 8
        %s218 = scalar_lea.vmem %s2, %s217
        %v219 = vld [vmem:[%s184] sm:$0xff]
        %v220 = vld [vmem:[%s184 + $0x8] sm:$0xff]
        %v221 = vld [vmem:[#allocation5] sm:$0xff]
        %v222 = vld [vmem:[#allocation5 + $0x8] sm:$0xff]
        %v223 = vld [vmem:[#allocation5 + $0x10] sm:$0xff]
        %v224 = vld [vmem:[#allocation5 + $0x18] sm:$0xff]
        %v225 = vld [vmem:[#allocation5 + $0x20] sm:$0xff]
        %v226 = vld [vmem:[#allocation5 + $0x28] sm:$0xff]
        %v227 = vld [vmem:[#allocation5 + $0x30] sm:$0xff]
        %v228 = vld [vmem:[#allocation5 + $0x38] sm:$0xff]
        %v229 = vld [vmem:[#allocation5 + $0x40] sm:$0xff]
        %v230 = vld [vmem:[#allocation5 + $0x48] sm:$0xff]
        %v231 = vld [vmem:[#allocation5 + $0x50] sm:$0xff]
        %v232 = vld [vmem:[#allocation5 + $0x58] sm:$0xff]
        %v233 = vld [vmem:[#allocation5 + $0x60] sm:$0xff]
        %v234 = vld [vmem:[#allocation5 + $0x68] sm:$0xff]
        %v235 = vld [vmem:[#allocation5 + $0x70] sm:$0xff]
        %v236 = vld [vmem:[#allocation5 + $0x78] sm:$0xff]
        %v237 = vld [vmem:[#allocation5 + $0x80] sm:$0xff]
        %v238 = vld [vmem:[#allocation5 + $0x88] sm:$0xff]
        %v239 = vld [vmem:[#allocation5 + $0x90] sm:$0xff]
        %v240 = vld [vmem:[#allocation5 + $0x98] sm:$0xff]
        %v241 = vld [vmem:[#allocation5 + $0xa0] sm:$0xff]
        %v242 = vld [vmem:[#allocation5 + $0xa8] sm:$0xff]
        %v243 = vld [vmem:[#allocation5 + $0xb0] sm:$0xff]
        %v244 = vld [vmem:[#allocation5 + $0xb8] sm:$0xff]
        %v245 = vld [vmem:[#allocation5 + $0xc0] sm:$0xff]
        %v246 = vld [vmem:[#allocation5 + $0xc8] sm:$0xff]
        %v247 = vld [vmem:[#allocation5 + $0xd0] sm:$0xff]
        %v248 = vld [vmem:[#allocation5 + $0xd8] sm:$0xff]
        %v249 = vld [vmem:[#allocation5 + $0xe0] sm:$0xff]
        %v250 = vld [vmem:[#allocation5 + $0xe8] sm:$0xff]
        %v251 = vld [vmem:[#allocation5 + $0xf0] sm:$0xff]
        %v252 = vld [vmem:[#allocation5 + $0xf8] sm:$0xff]
        %253 = vmatprep.subr.mxu0 0.0
        %254 = vmatpush1.msra.mxu0 %v236
        %255 = vmatprep.subr.mxu0 0.0
        %256 = vmatpush1.msra.mxu0 %v235
        %257 = vmatprep.subr.mxu0 0.0
        %258 = vmatpush1.msra.mxu0 %v234
        %259 = vmatprep.subr.mxu0 0.0
        %260 = vmatpush1.msra.mxu0 %v233
        %261 = vmatprep.subr.mxu0 0.0
        %262 = vmatpush1.msra.mxu0 %v232
        %263 = vmatprep.subr.mxu0 0.0
        %264 = vmatpush1.msra.mxu0 %v231
        %265 = vmatprep.subr.mxu0 0.0
        %266 = vmatpush1.msra.mxu0 %v230
        %267 = vmatprep.subr.mxu0 0.0
        %268 = vmatpush1.msra.mxu0 %v229
        %269 = vmatprep.subr.mxu0 0.0
        %270 = vmatpush1.msra.mxu0 %v228
        %271 = vmatprep.subr.mxu0 0.0
        %272 = vmatpush1.msra.mxu0 %v227
        %273 = vmatprep.subr.mxu0 0.0
        %274 = vmatpush1.msra.mxu0 %v226
        %275 = vmatprep.subr.mxu0 0.0
        %276 = vmatpush1.msra.mxu0 %v225
        %277 = vmatprep.subr.mxu0 0.0
        %278 = vmatpush1.msra.mxu0 %v224
        %279 = vmatprep.subr.mxu0 0.0
        %280 = vmatpush1.msra.mxu0 %v223
        %281 = vmatprep.subr.mxu0 0.0
        %282 = vmatpush1.msra.mxu0 %v222
        %283 = vmatprep.subr.mxu0 0.0
        %284 = vmatpush1.msra.mxu0 %v221
        %285 = vmatprep.subr.mxu0 0.0
        %286 = vmatpush2.msra.mxu0 %v252
        %287 = vmatprep.subr.mxu0 0.0
        %288 = vmatpush2.msra.mxu0 %v251
        %289 = vmatprep.subr.mxu0 0.0
        %290 = vmatpush2.msra.mxu0 %v250
        %291 = vmatprep.subr.mxu0 0.0
        %292 = vmatpush2.msra.mxu0 %v249
        %293 = vmatprep.subr.mxu0 0.0
        %294 = vmatpush2.msra.mxu0 %v248
        %295 = vmatprep.subr.mxu0 0.0
        %296 = vmatpush2.msra.mxu0 %v247
        %297 = vmatprep.subr.mxu0 0.0
        %298 = vmatpush2.msra.mxu0 %v246
        %299 = vmatprep.subr.mxu0 0.0
        %300 = vmatpush2.msra.mxu0 %v245
        %301 = vmatprep.subr.mxu0 0.0
        %302 = vmatpush2.msra.mxu0 %v244
        %303 = vmatprep.subr.mxu0 0.0
        %304 = vmatpush2.msra.mxu0 %v243
        %305 = vmatprep.subr.mxu0 0.0
        %306 = vmatpush2.msra.mxu0 %v242
        %307 = vmatprep.subr.mxu0 0.0
        %308 = vmatpush2.msra.mxu0 %v241
        %309 = vmatprep.subr.mxu0 0.0
        %310 = vmatpush2.msra.mxu0 %v240
        %311 = vmatprep.subr.mxu0 0.0
        %312 = vmatpush2.msra.mxu0 %v239
        %313 = vmatprep.subr.mxu0 0.0
        %314 = vmatpush2.msra.mxu0 %v238
        %315 = vmatprep.subr.mxu0 0.0
        %316 = vmatpush2.msra.mxu0 %v237
        %317 = vmatprep.mubr.f32.mxu0 %v220
        %318 = vmatmul.mubr.f32.gmra.mxu0 %v219
        %v319 = vpop.f32.mrf.mxu0
        %v320 = vadd.f32 0.0, %v319
        %v321 = vpop.f32.mrf.mxu0
        %322 = vdwg.mxu0
        %v323 = vmul.f32 %v320, %v320
        %324 = vadd.xlane.f32.xlu0 %v323
        %v325 = vpop.xlane.xlu0 %324
        %v326 = vld [vmem:[%s218] sm:$0xff]
        %v327 = vmax.f32 %v325, 1e-24
        %v328 = vrsqrt.pop %v327
        %v329 = vmul.f32 %v326, %v328
        %331 = vset.pattern.permute.xlu0 0
        %332 = vperm.xlu0 %331, %v329
        %v333 = vpop.permute.xlu0 %332
        %v335 = vmul.f32 %v320, %v333
        %336 = vst [vmem:[%s214] sm:$0xff] %v335
        %s337 = sand.u32 %s102, 1
        %s338 = scalar_lea.sflag [#allocation4], %s337
        %s339 = sand.u32 %s102, 1
        %s340 = smul.addr %s339, 8
        %s341 = scalar_lea.vmem [#allocation7], %s340
        // Predicated region
        $region41: #{tpu_custom_call.1} parent=31 // pred_check
          %p342 = pneg %p112
        $region42: #{tpu_custom_call.1} parent=31 // pred_check_branch
          %344 = sbr.rel (%p342) target = $region44
        $region43: #{tpu_custom_call.1} parent=31 // pred_region
          %s346 = ssub.s32 128, 128
          %347 = vsyncadd %s338, %s346
          %s348 = smul.addr %s21, 128
          %s349 = scalar_lea.hbm %s3, %s348
          %s351 = sshll.u32 %s341, 4
          %s352 = int_to_ptr.vmem [resolvable:$true] %s351
          %354 = dma.vmem_to_hbm [thread:$0]  %s352, 128, %s349, %s338
        $region44: #{tpu_custom_call.1} parent=31 // pred_fallthru
          _
      $region32: #{tpu_custom_call.1} parent=5 // pred_fallthru
        _
      %p355 = scmp.le.s32.totalorder 2, %s16
      // Predicated region
      $region45: #{tpu_custom_call.1} parent=5 // pred_check
        %p356 = pneg %p355
      $region46: #{tpu_custom_call.1} parent=5 // pred_check_branch
        %358 = sbr.rel (%p356) target = $region48
      $region47: #{tpu_custom_call.1} parent=5 // pred_region
        %s359 = ssub.s32 %s16, 2
        // Predicated region
        $region49: #{tpu_custom_call.1} parent=47 // pred_check
          %p360 = pneg %p118
        $region50: #{tpu_custom_call.1} parent=47 // pred_check_branch
          %362 = sbr.rel (%p360) target = $region52
        $region51: #{tpu_custom_call.1} parent=47 // pred_region
          %s363 = sand.u32 %s103, 1
          %s364 = scalar_lea.sflag [#allocation4], %s363
          %s365 = sand.u32 %s103, 1
          %s366 = smul.addr %s365, 8
          %s367 = scalar_lea.vmem [#allocation7], %s366
          %368 = dma.done %s364, 128
        $region52: #{tpu_custom_call.1} parent=47 // pred_fallthru
          _
      $region48: #{tpu_custom_call.1} parent=5 // pred_fallthru
        _
    $region6: #{tpu_custom_call.1} parent=1 // loop_footer
      %s20 = sadd.s32 1, %s16
    $region7: #{tpu_custom_call.1} parent=1 // loop_footer_branch
      %15 = sbr.rel target = $region3
    $region8: #{tpu_custom_call.1} parent=1 // loop_exit
      _
    %369 = vsyncpa [#allocation3], 1
    %s370 = scalar_lea.sflag [#allocation3], 1
    %371 = vsyncpa %s370, 1
    %372 = vsyncpa [#allocation6], 1
    %373 = vsyncpa [#allocation4], 1
    %s374 = scalar_lea.sflag [#allocation4], 1
    %375 = vsyncpa %s374, 1

</llo_original>
